<compile_context>
chip_gen: v5e
topology: v5e:2x2
jax: 0.10.0
libtpu: 0.0.40
codegen_flags: <defaults>
</compile_context>

<pallas_src>
import functools

import jax
import jax.numpy as jnp
from jax import lax
from jax.experimental import pallas as pl
from jax.experimental.pallas import tpu as pltpu


def _softloss_kernel(stu_ref, pt1_ref, pt2_ref, out_ref, *, n_cols,
                     n_rows_total, block_rows, temperature):
    """One grid step: a block of rows, full N width. Writes one partial sum."""
    stu = stu_ref[...].astype(jnp.float32)
    pt1 = pt1_ref[...].astype(jnp.float32)
    pt2 = pt2_ref[...].astype(jnp.float32)

    inv_t = jnp.float32(1.0 / temperature)
    inv_n = jnp.float32(1.0 / n_cols)
    inv_nm1 = jnp.float32(1.0 / (n_cols - 1))

    def standardize_scaled(x):
        # local_standardize (unbiased std, torch.std default) with the 1/T
        # distillation scale folded into the per-row multiplier.  Single pass:
        # row sum & sumsq together, var = (sumsq - sum*mean)/(N-1); rsqrt runs
        # on the EUP slot instead of an N-wide divide on the VPU.
        row_sum = jnp.sum(x, axis=-1, keepdims=True)
        row_sumsq = jnp.sum(x * x, axis=-1, keepdims=True)
        mean = row_sum * inv_n
        var = (row_sumsq - row_sum * mean) * inv_nm1
        return (x - mean) * (inv_t * lax.rsqrt(var))

    # scores_add_fusion of the two standardized teachers, already divided by T
    t = standardize_scaled(pt1) + standardize_scaled(pt2)
    # student preprocess = 'constant' (identity), then / T
    s = stu * inv_t

    # log_softmax(student / T)
    s_shift = s - jnp.max(s, axis=-1, keepdims=True)
    log_p_s = s_shift - jnp.log(jnp.sum(jnp.exp(s_shift), axis=-1,
                                        keepdims=True))

    # softmax(teacher / T) statistics -- p_t itself is never materialized
    t_shift = t - jnp.max(t, axis=-1, keepdims=True)
    t_exp = jnp.exp(t_shift)
    t_sum = jnp.sum(t_exp, axis=-1, keepdims=True)

    # KL(p_t || p_s) per row, with the per-row scalar log(t_sum) pulled out of
    # the N-wide expression:
    #   sum_j p_t * (log p_t - log p_s)
    # = [ sum_j t_exp * (t_shift - log_p_s) ] / t_sum  -  log(t_sum)
    inner = jnp.sum(t_exp * (t_shift - log_p_s), axis=-1, keepdims=True)
    kl = inner / t_sum - jnp.log(t_sum)            # (block_rows, 1), exact

    # Mask the out-of-range rows of the (ragged) final block, then reduce to a
    # single per-block scalar.  OOB rows of the input tile may hold garbage
    # (even NaN); jnp.where selects, so nothing propagates.
    if n_rows_total % block_rows != 0:
        row0 = pl.program_id(0) * block_rows
        rows = lax.broadcasted_iota(jnp.int32, (block_rows, 1), 0) + row0
        kl = jnp.where(rows < n_rows_total, kl, jnp.float32(0.0))
    partial = jnp.sum(kl)

    # Lane-dense, unmasked broadcast store; wrapper reads [:, 0, 0].
    out_ref[...] = jnp.broadcast_to(partial, out_ref.shape)


def _default_vmem_limit_bytes():
    # Generation-aware scoped-VMEM limit: ~3/4 of physical, capped at 100 MiB.
    # v5e/v6e (128 MiB physical) -> 96 MiB; v7x (64 MiB) -> 48 MiB.
    try:
        info = pltpu.get_tpu_info()
        cap = int(getattr(info, "vmem_capacity_bytes", 64 * 1024 * 1024))
    except Exception:  # not on TPU / API unavailable -> conservative default
        cap = 64 * 1024 * 1024
    return min((cap * 3) // 4, 100 * 1024 * 1024)


def _round_up(x, m):
    return ((x + m - 1) // m) * m


def cal_softloss_fusion_scores(stu_dis, pt1_dis, pt2_dis, *, temperature=4.0,
                               block_rows=None, vmem_limit_bytes=None):
    """Pallas equivalent of cal_softloss_FusionScores.forward.

    Returns (soft_loss scalar jnp.float32, loss_record dict).  The dict holds
    the traced scalar (no host sync / .item()); convert on the host if needed.
    """
    B, N = stu_dis.shape
    assert pt1_dis.shape == (B, N) and pt2_dis.shape == (B, N)
    assert N >= 2, "need at least 2 columns for an unbiased std"

    if vmem_limit_bytes is None:
        vmem_limit_bytes = _default_vmem_limit_bytes()

    itemsize = max(jnp.dtype(stu_dis.dtype).itemsize,
                   jnp.dtype(pt1_dis.dtype).itemsize,
                   jnp.dtype(pt2_dis.dtype).itemsize)
    # sublane packing: 8 rows for 32-bit inputs, 16 for bf16, 32 for 8-bit
    row_align = {4: 8, 2: 16, 1: 32}.get(itemsize, 8)

    if block_rows is None:
        # ~12 f32 (block_rows, N) tile-equivalents live at once: 3 inputs x 2
        # pipeline buffers (counted at f32 -- the in-kernel f32 casts dominate
        # even for bf16 inputs) plus ~6 f32 temporaries (x*x, t, t_exp,
        # log_p_s, the KL product, ...).
        budget = int(vmem_limit_bytes * 0.85)
        cap = budget // (12 * N * 4)
        cap = max(row_align, (cap // row_align) * row_align)
        cap = min(cap, 1024)                       # diminishing returns past ~1K
        # keep >= ~4 grid steps so both v7x TensorCores get work
        # (harmless on 1-TC v5e/v6e: tiles stay >= B/4 rows)
        tgt = _round_up(max(1, -(-B // 4)), row_align)
        block_rows = min(cap, tgt)
    block_rows = max(row_align, (block_rows // row_align) * row_align)

    num_blocks = pl.cdiv(B, block_rows)
    row_spec = pl.BlockSpec((block_rows, N), lambda i: (i, 0))
    out_spec = pl.BlockSpec((1, 8, 128), lambda i: (i, 0, 0))

    kernel = functools.partial(_softloss_kernel, n_cols=N, n_rows_total=B,
                               block_rows=block_rows, temperature=temperature)

    partials = pl.pallas_call(
        kernel,
        out_shape=jax.ShapeDtypeStruct((num_blocks, 8, 128), jnp.float32),
        grid_spec=pltpu.PrefetchScalarGridSpec(
            num_scalar_prefetch=0,
            grid=(num_blocks,),
            in_specs=[row_spec, row_spec, row_spec],
            out_specs=out_spec,
        ),
        compiler_params=pltpu.CompilerParams(
            dimension_semantics=("parallel",),
            vmem_limit_bytes=vmem_limit_bytes,
        ),
    )(stu_dis, pt1_dis, pt2_dis)

    # KL_divergency: batchmean reduction over the real rows, scaled by T^2
    soft_loss = (jnp.sum(partials[:, 0, 0]) / jnp.float32(B)) * \
        jnp.float32(temperature) ** 2
    loss_record = {"soft_loss": soft_loss}  # traced scalar; no .item() here
    return soft_loss, loss_record


def _reference(stu, pt1, pt2, temperature=4.0):
    """Plain-JAX reference for a sanity check."""
    def std_norm(x):
        m = jnp.mean(x, axis=-1, keepdims=True)
        s = jnp.std(x, axis=-1, keepdims=True, ddof=1)
        return (x - m) / s

    teacher = std_norm(pt1) + std_norm(pt2)
    log_p_s = jax.nn.log_softmax(stu / temperature, axis=-1)
    p_t = jax.nn.softmax(teacher / temperature, axis=-1)
    log_p_t = jax.nn.log_softmax(teacher / temperature, axis=-1)
    kl = jnp.sum(p_t * (log_p_t - log_p_s), axis=-1)
    return jnp.mean(kl) * temperature ** 2


if __name__ == "__main__":
    key = jax.random.PRNGKey(0)
    k1, k2, k3 = jax.random.split(key, 3)

    # small: 13 (h, r) queries, 256 candidate-entity scores each
    # (B not a multiple of 8 to exercise the in-kernel tail-row masking path)
    B, N = 13, 256
    stu_dis = jax.random.normal(k1, (B, N), dtype=jnp.float32) * 2.0
    pt1_dis = jax.random.normal(k2, (B, N), dtype=jnp.float32) * 3.0 + 0.5
    pt2_dis = jax.random.normal(k3, (B, N), dtype=jnp.float32) * 1.5 - 0.2

    soft_loss, loss_record = cal_softloss_fusion_scores(
        stu_dis, pt1_dis, pt2_dis, temperature=4.0)
    soft_loss = jax.block_until_ready(soft_loss)

    ref = jax.block_until_ready(_reference(stu_dis, pt1_dis, pt2_dis, 4.0))
    assert jnp.allclose(soft_loss, ref, rtol=1e-3, atol=1e-5), (soft_loss, ref)

    print("KERNEL_OK")
</pallas_src>

<mosaic_0001>
module attributes {stable_mosaic.version = 11 : i64} {
  func.func @_softloss_kernel(%arg0: i32, %arg1: memref<8x256xf32, #tpu.memory_space<vmem>>, %arg2: memref<8x256xf32, #tpu.memory_space<vmem>>, %arg3: memref<8x256xf32, #tpu.memory_space<vmem>>, %arg4: memref<1x8x128xf32, #tpu.memory_space<vmem>>) attributes {dimension_semantics = [#tpu.dimension_semantics<parallel>], iteration_bounds = array<i64: 2>, scalar_prefetch = 0 : i64, scratch_operands = 0 : i64, tpu.core_type = #tpu.core_type<tc>, window_params = [{transform_indices = @transform_0, window_bounds = array<i64: 8, 256>}, {transform_indices = @transform_1, window_bounds = array<i64: 8, 256>}, {transform_indices = @transform_2, window_bounds = array<i64: 8, 256>}, {transform_indices = @transform_3, window_bounds = array<i64: 1, 8, 128>}]} {
    %c0 = arith.constant 0 : index
    %c0_0 = arith.constant 0 : index
    %0 = vector.load %arg1[%c0, %c0_0] : memref<8x256xf32, #tpu.memory_space<vmem>>, vector<8x256xf32>
    %c0_1 = arith.constant 0 : index
    %c0_2 = arith.constant 0 : index
    %1 = vector.load %arg2[%c0_1, %c0_2] : memref<8x256xf32, #tpu.memory_space<vmem>>, vector<8x256xf32>
    %c0_3 = arith.constant 0 : index
    %c0_4 = arith.constant 0 : index
    %2 = vector.load %arg3[%c0_3, %c0_4] : memref<8x256xf32, #tpu.memory_space<vmem>>, vector<8x256xf32>
    %cst = arith.constant dense<0.000000e+00> : vector<8xf32>
    %3 = vector.multi_reduction <add>, %1, %cst [1] : vector<8x256xf32> to vector<8xf32>
    %4 = vector.shape_cast %3 : vector<8xf32> to vector<8x1xf32>
    %5 = arith.mulf %1, %1 : vector<8x256xf32>
    %cst_5 = arith.constant dense<0.000000e+00> : vector<8xf32>
    %6 = vector.multi_reduction <add>, %5, %cst_5 [1] : vector<8x256xf32> to vector<8xf32>
    %7 = vector.shape_cast %6 : vector<8xf32> to vector<8x1xf32>
    %cst_6 = arith.constant 3.906250e-03 : f32
    %8 = vector.broadcast %cst_6 : f32 to vector<8x1xf32>
    %9 = arith.mulf %4, %8 : vector<8x1xf32>
    %10 = arith.mulf %4, %9 : vector<8x1xf32>
    %11 = arith.subf %7, %10 : vector<8x1xf32>
    %cst_7 = arith.constant 0.00392156886 : f32
    %12 = vector.broadcast %cst_7 : f32 to vector<8x1xf32>
    %13 = arith.mulf %11, %12 : vector<8x1xf32>
    %14 = vector.broadcast %9 : vector<8x1xf32> to vector<8x256xf32>
    %15 = arith.subf %1, %14 : vector<8x256xf32>
    %16 = math.rsqrt %13 : vector<8x1xf32>
    %cst_8 = arith.constant 2.500000e-01 : f32
    %17 = vector.broadcast %cst_8 : f32 to vector<8x1xf32>
    %18 = arith.mulf %17, %16 : vector<8x1xf32>
    %19 = vector.broadcast %18 : vector<8x1xf32> to vector<8x256xf32>
    %20 = arith.mulf %15, %19 : vector<8x256xf32>
    %cst_9 = arith.constant dense<0.000000e+00> : vector<8xf32>
    %21 = vector.multi_reduction <add>, %2, %cst_9 [1] : vector<8x256xf32> to vector<8xf32>
    %22 = vector.shape_cast %21 : vector<8xf32> to vector<8x1xf32>
    %23 = arith.mulf %2, %2 : vector<8x256xf32>
    %cst_10 = arith.constant dense<0.000000e+00> : vector<8xf32>
    %24 = vector.multi_reduction <add>, %23, %cst_10 [1] : vector<8x256xf32> to vector<8xf32>
    %25 = vector.shape_cast %24 : vector<8xf32> to vector<8x1xf32>
    %cst_11 = arith.constant 3.906250e-03 : f32
    %26 = vector.broadcast %cst_11 : f32 to vector<8x1xf32>
    %27 = arith.mulf %22, %26 : vector<8x1xf32>
    %28 = arith.mulf %22, %27 : vector<8x1xf32>
    %29 = arith.subf %25, %28 : vector<8x1xf32>
    %cst_12 = arith.constant 0.00392156886 : f32
    %30 = vector.broadcast %cst_12 : f32 to vector<8x1xf32>
    %31 = arith.mulf %29, %30 : vector<8x1xf32>
    %32 = vector.broadcast %27 : vector<8x1xf32> to vector<8x256xf32>
    %33 = arith.subf %2, %32 : vector<8x256xf32>
    %34 = math.rsqrt %31 : vector<8x1xf32>
    %cst_13 = arith.constant 2.500000e-01 : f32
    %35 = vector.broadcast %cst_13 : f32 to vector<8x1xf32>
    %36 = arith.mulf %35, %34 : vector<8x1xf32>
    %37 = vector.broadcast %36 : vector<8x1xf32> to vector<8x256xf32>
    %38 = arith.mulf %33, %37 : vector<8x256xf32>
    %39 = arith.addf %20, %38 : vector<8x256xf32>
    %cst_14 = arith.constant 2.500000e-01 : f32
    %40 = vector.broadcast %cst_14 : f32 to vector<8x256xf32>
    %41 = arith.mulf %0, %40 : vector<8x256xf32>
    %cst_15 = arith.constant dense<0xFF800000> : vector<8xf32>
    %42 = vector.multi_reduction <maximumf>, %41, %cst_15 [1] : vector<8x256xf32> to vector<8xf32>
    %43 = vector.shape_cast %42 : vector<8xf32> to vector<8x1xf32>
    %44 = vector.broadcast %43 : vector<8x1xf32> to vector<8x256xf32>
    %45 = arith.subf %41, %44 : vector<8x256xf32>
    %46 = math.exp %45 : vector<8x256xf32>
    %cst_16 = arith.constant dense<0.000000e+00> : vector<8xf32>
    %47 = vector.multi_reduction <add>, %46, %cst_16 [1] : vector<8x256xf32> to vector<8xf32>
    %48 = vector.shape_cast %47 : vector<8xf32> to vector<8x1xf32>
    %49 = math.log %48 : vector<8x1xf32>
    %50 = vector.broadcast %49 : vector<8x1xf32> to vector<8x256xf32>
    %51 = arith.subf %45, %50 : vector<8x256xf32>
    %cst_17 = arith.constant dense<0xFF800000> : vector<8xf32>
    %52 = vector.multi_reduction <maximumf>, %39, %cst_17 [1] : vector<8x256xf32> to vector<8xf32>
    %53 = vector.shape_cast %52 : vector<8xf32> to vector<8x1xf32>
    %54 = vector.broadcast %53 : vector<8x1xf32> to vector<8x256xf32>
    %55 = arith.subf %39, %54 : vector<8x256xf32>
    %56 = math.exp %55 : vector<8x256xf32>
    %cst_18 = arith.constant dense<0.000000e+00> : vector<8xf32>
    %57 = vector.multi_reduction <add>, %56, %cst_18 [1] : vector<8x256xf32> to vector<8xf32>
    %58 = vector.shape_cast %57 : vector<8xf32> to vector<8x1xf32>
    %59 = arith.subf %55, %51 : vector<8x256xf32>
    %60 = arith.mulf %56, %59 : vector<8x256xf32>
    %cst_19 = arith.constant dense<0.000000e+00> : vector<8xf32>
    %61 = vector.multi_reduction <add>, %60, %cst_19 [1] : vector<8x256xf32> to vector<8xf32>
    %62 = vector.shape_cast %61 : vector<8xf32> to vector<8x1xf32>
    %63 = arith.divf %62, %58 : vector<8x1xf32>
    %64 = math.log %58 : vector<8x1xf32>
    %65 = arith.subf %63, %64 : vector<8x1xf32>
    %c8_i32 = arith.constant 8 : i32
    %66 = arith.muli %arg0, %c8_i32 : i32
    %67 = tpu.iota {dimensions = array<i32: 0>} : vector<8x1xi32>
    %68 = vector.broadcast %66 : i32 to vector<8x1xi32>
    %69 = arith.addi %67, %68 : vector<8x1xi32>
    %c13_i32 = arith.constant 13 : i32
    %70 = vector.broadcast %c13_i32 : i32 to vector<8x1xi32>
    %71 = arith.cmpi slt, %69, %70 : vector<8x1xi32>
    %cst_20 = arith.constant 0.000000e+00 : f32
    %72 = vector.broadcast %cst_20 : f32 to vector<8x1xf32>
    %73 = arith.select %71, %65, %72 : vector<8x1xi1>, vector<8x1xf32>
    %74 = vector.shape_cast %73 : vector<8x1xf32> to vector<1x8x1xf32>
    %cst_21 = arith.constant dense<0.000000e+00> : vector<1xf32>
    %75 = vector.multi_reduction <add>, %74, %cst_21 [1, 2] : vector<1x8x1xf32> to vector<1xf32>
    %76 = vector.shape_cast %75 : vector<1xf32> to vector<1x1x1xf32>
    %77 = vector.extract %76[0, 0, 0] : f32 from vector<1x1x1xf32>
    %78 = vector.broadcast %77 : f32 to vector<1x8x128xf32>
    %c0_22 = arith.constant 0 : index
    %c0_23 = arith.constant 0 : index
    %c0_24 = arith.constant 0 : index
    %79 = vector.load %arg4[%c0_22, %c0_23, %c0_24] : memref<1x8x128xf32, #tpu.memory_space<vmem>>, vector<1x8x128xf32>
    tpu.vector_store %arg4[%c0_22, %c0_23, %c0_24], %78 {strides = array<i32>} : memref<1x8x128xf32, #tpu.memory_space<vmem>>, vector<1x8x128xf32>,
    return
  }
  func.func @transform_0(%arg0: i32) -> (i32, i32) {
    %c0_i32 = arith.constant 0 : i32
    %c0_i32_0 = arith.constant 0 : i32
    return %arg0, %c0_i32 : i32, i32
  }
  func.func @transform_1(%arg0: i32) -> (i32, i32) {
    %c0_i32 = arith.constant 0 : i32
    %c0_i32_0 = arith.constant 0 : i32
    return %arg0, %c0_i32 : i32, i32
  }
  func.func @transform_2(%arg0: i32) -> (i32, i32) {
    %c0_i32 = arith.constant 0 : i32
    %c0_i32_0 = arith.constant 0 : i32
    return %arg0, %c0_i32 : i32, i32
  }
  func.func @transform_3(%arg0: i32) -> (i32, i32, i32) {
    %c0_i32 = arith.constant 0 : i32
    %c0_i32_0 = arith.constant 0 : i32
    %c0_i32_1 = arith.constant 0 : i32
    return %arg0, %c0_i32, %c0_i32_0 : i32, i32, i32
  }
}

</mosaic_0001>

<llo_original>
// kernel: tpu_custom_call.1
$region0: #{tpu_custom_call.1}
  #allocation0 [shape = 'u32[]', space=smem, size = 0x4, offset = 0x4, fixed_abs, tag = 'smem constant byte address 0x4 - core index']
  #allocation1 [shape = 'u32[72,128]{1,0:T(1,128)}', space=vmem, size = 0x9000, scoped, tag = 'internal scratch']
  %s0 = inlined_call_operand.hbm [shape: f32[13,256], index: 0, kind: input, shape index: {}]
  %s1 = inlined_call_operand.hbm [shape: f32[13,256], index: 1, kind: input, shape index: {}]
  %s2 = inlined_call_operand.hbm [shape: f32[13,256], index: 2, kind: input, shape index: {}]
  %s3 = inlined_call_operand.hbm [shape: f32[2,8,128], index: 3, kind: output, shape index: {}]
  %s4 = sld [smem:[#allocation0]]
  $region57: #{tpu_custom_call.1} parent=0
    _
  %s6 = ssub.s32 1, %s4
  %s7 = scalar_select 0, %s6, %s4
  $region1: #{tpu_custom_call.1} parent=0
    #allocation2 [shape = 'u8[16384]{0}', space=vmem, size = 0x4000, scoped, tag = 'input window, operand 0']
    #allocation3 [shape = 's32[2]{0}', space=sflag, size = 0x8, scoped, tag = 'scoped memory for tpu_custom_call.1']
    #allocation4 [shape = 's32[2]{0}', space=sflag, size = 0x8, scoped, tag = 'scoped memory for tpu_custom_call.1']
    #allocation5 [shape = 'u8[16384]{0}', space=vmem, size = 0x4000, scoped, tag = 'input window, operand 1']
    #allocation6 [shape = 's32[2]{0}', space=sflag, size = 0x8, scoped, tag = 'scoped memory for tpu_custom_call.1']
    #allocation7 [shape = 'u8[16384]{0}', space=vmem, size = 0x4000, scoped, tag = 'input window, operand 2']
    #allocation8 [shape = 'u8[8192]{0}', space=vmem, size = 0x2000, scoped, tag = 'output window, operand 0']
    %8 = vsyncpa [#allocation3], 0
    %s9 = scalar_lea.sflag [#allocation3], 1
    %10 = vsyncpa %s9, 0
    %11 = vsyncpa [#allocation6], 0
    %s12 = scalar_lea.sflag [#allocation6], 1
    %13 = vsyncpa %s12, 0
    %14 = vsyncpa [#allocation4], 0
    %s15 = scalar_lea.sflag [#allocation4], 1
    %16 = vsyncpa %s15, 0
    loop: start=0, step=1, limit=4
    $region2: #{tpu_custom_call.1} parent=1 // loop_pre_header
      _
    $region3: #{tpu_custom_call.1} parent=1 // loop_header
      %s18 = sphi 0, %s22
      %p19 = scmp.ge.s32.totalorder %s18, 4
      %s28 = sphi 0, %s30
      %s31 = sphi 0, %s28
      %s32 = sphi 0, %s31
      %s48 = sphi 0, %s32
      %s54 = sphi 0, %s56
      %s57 = sphi 0, %s54
      %s58 = sphi 0, %s57
      %s74 = sphi 0, %s58
      %s80 = sphi 0, %s82
      %s83 = sphi 0, %s80
      %s84 = sphi 0, %s83
      %s100 = sphi 0, %s84
      %s106 = sphi 0, %s108
      %s109 = sphi 0, %s106
      %s110 = sphi 0, %s109
      %s126 = sphi 0, %s110
    $region4: #{tpu_custom_call.1} parent=1 // loop_header_branch
      %21 = sbr.rel (%p19) target = $region8
    $region5: #{tpu_custom_call.1} parent=1 // loop_body
      %s23 = ssub.s32 %s18, 1
      %s24 = ssub.s32 %s18, 2
      %s25 = sadd.s32 %s18, 1
      %s26 = ssub.s32 %s18, %s25
      %p27 = scmp.eq.s32.totalorder %s26, 0
      %s29 = sadd.s32 %s28, 1
      %s30 = scalar_select %p27, %s28, %s29
      %p33 = pneg %p27
      %p34 = scmp.eq.s32.totalorder %s18, 1
      %p35 = por %p33, %p34
      %p36 = scmp.ne.s32.totalorder %s28, %s31
      %p37 = scmp.eq.s32.totalorder %s18, 0
      %p38 = por %p36, %p37
      %p39 = scmp.ne.s32.totalorder %s28, %s31
      %p40 = scmp.eq.s32.totalorder %s23, 1
      %p41 = por %p39, %p40
      %p42 = scmp.ne.s32.totalorder %s31, %s32
      %p43 = scmp.eq.s32.totalorder %s23, 0
      %p44 = por %p42, %p43
      %p45 = scmp.ne.s32.totalorder %s31, %s32
      %p46 = scmp.eq.s32.totalorder %s24, 1
      %p47 = por %p45, %p46
      %p49 = scmp.ne.s32.totalorder %s32, %s48
      %p50 = scmp.eq.s32.totalorder %s24, 0
      %p51 = por %p49, %p50
      %s52 = ssub.s32 %s18, %s25
      %p53 = scmp.eq.s32.totalorder %s52, 0
      %s55 = sadd.s32 %s54, 1
      %s56 = scalar_select %p53, %s54, %s55
      %p59 = pneg %p53
      %p60 = scmp.eq.s32.totalorder %s18, 1
      %p61 = por %p59, %p60
      %p62 = scmp.ne.s32.totalorder %s54, %s57
      %p63 = scmp.eq.s32.totalorder %s18, 0
      %p64 = por %p62, %p63
      %p65 = scmp.ne.s32.totalorder %s54, %s57
      %p66 = scmp.eq.s32.totalorder %s23, 1
      %p67 = por %p65, %p66
      %p68 = scmp.ne.s32.totalorder %s57, %s58
      %p69 = scmp.eq.s32.totalorder %s23, 0
      %p70 = por %p68, %p69
      %p71 = scmp.ne.s32.totalorder %s57, %s58
      %p72 = scmp.eq.s32.totalorder %s24, 1
      %p73 = por %p71, %p72
      %p75 = scmp.ne.s32.totalorder %s58, %s74
      %p76 = scmp.eq.s32.totalorder %s24, 0
      %p77 = por %p75, %p76
      %s78 = ssub.s32 %s18, %s25
      %p79 = scmp.eq.s32.totalorder %s78, 0
      %s81 = sadd.s32 %s80, 1
      %s82 = scalar_select %p79, %s80, %s81
      %p85 = pneg %p79
      %p86 = scmp.eq.s32.totalorder %s18, 1
      %p87 = por %p85, %p86
      %p88 = scmp.ne.s32.totalorder %s80, %s83
      %p89 = scmp.eq.s32.totalorder %s18, 0
      %p90 = por %p88, %p89
      %p91 = scmp.ne.s32.totalorder %s80, %s83
      %p92 = scmp.eq.s32.totalorder %s23, 1
      %p93 = por %p91, %p92
      %p94 = scmp.ne.s32.totalorder %s83, %s84
      %p95 = scmp.eq.s32.totalorder %s23, 0
      %p96 = por %p94, %p95
      %p97 = scmp.ne.s32.totalorder %s83, %s84
      %p98 = scmp.eq.s32.totalorder %s24, 1
      %p99 = por %p97, %p98
      %p101 = scmp.ne.s32.totalorder %s84, %s100
      %p102 = scmp.eq.s32.totalorder %s24, 0
      %p103 = por %p101, %p102
      %s104 = ssub.s32 %s18, %s25
      %p105 = scmp.eq.s32.totalorder %s104, 0
      %s107 = sadd.s32 %s106, 1
      %s108 = scalar_select %p105, %s106, %s107
      %p111 = pneg %p105
      %p112 = scmp.eq.s32.totalorder %s18, 1
      %p113 = por %p111, %p112
      %p114 = scmp.ne.s32.totalorder %s106, %s109
      %p115 = scmp.eq.s32.totalorder %s18, 0
      %p116 = por %p114, %p115
      %p117 = scmp.ne.s32.totalorder %s106, %s109
      %p118 = scmp.eq.s32.totalorder %s23, 1
      %p119 = por %p117, %p118
      %p120 = scmp.ne.s32.totalorder %s109, %s110
      %p121 = scmp.eq.s32.totalorder %s23, 0
      %p122 = por %p120, %p121
      %p123 = scmp.ne.s32.totalorder %s109, %s110
      %p124 = scmp.eq.s32.totalorder %s24, 1
      %p125 = por %p123, %p124
      %p127 = scmp.ne.s32.totalorder %s110, %s126
      %p128 = scmp.eq.s32.totalorder %s24, 0
      %p129 = por %p127, %p128
      %p130 = scmp.le.s32.totalorder 1, %s18
      %p131 = scmp.lt.s32.totalorder %s18, 3
      %p132 = pnand %p130, %p131
      %p133 = pneg %p132
      // Predicated region
      $region9: #{tpu_custom_call.1} parent=5 // pred_check
        _
      $region10: #{tpu_custom_call.1} parent=5 // pred_check_branch
        %135 = sbr.rel (%p132) target = $region12
      $region11: #{tpu_custom_call.1} parent=5 // pred_region
        %s136 = ssub.s32 %s18, 1
      $region12: #{tpu_custom_call.1} parent=5 // pred_fallthru
        _
      %p137 = scmp.lt.s32.totalorder %s18, 2
      // Predicated region
      $region13: #{tpu_custom_call.1} parent=5 // pred_check
        %p138 = pneg %p137
      $region14: #{tpu_custom_call.1} parent=5 // pred_check_branch
        %140 = sbr.rel (%p138) target = $region16
      $region15: #{tpu_custom_call.1} parent=5 // pred_region
        // Predicated region
        $region17: #{tpu_custom_call.1} parent=15 // pred_check
          %p141 = pneg %p38
        $region18: #{tpu_custom_call.1} parent=15 // pred_check_branch
          %143 = sbr.rel (%p141) target = $region20
        $region19: #{tpu_custom_call.1} parent=15 // pred_region
          %s144 = sand.u32 %s28, 1
          %s145 = scalar_lea.sflag [#allocation3], %s144
          %s146 = sand.u32 %s28, 1
          %s147 = smul.addr %s146, 16
          %s148 = scalar_lea.vmem [#allocation2], %s147
          %150 = vsyncadd %s145, 0
          %s151 = smul.addr %s18, 2
          %s152 = smul.addr %s151, 8
          %s153 = scalar_lea.hbm %s0, %s152
          %s155 = sshll.u32 %s153, 4
          %s156 = int_to_ptr.hbm [resolvable:$true] %s155
          %s157 = sshll.u32 %s148, 4
          %s158 = int_to_ptr.vmem [resolvable:$true] %s157
          %160 = dma.hbm_to_vmem [thread:$0]  %s156, 256, %s158, %s145
        $region20: #{tpu_custom_call.1} parent=15 // pred_fallthru
          _
        // Predicated region
        $region21: #{tpu_custom_call.1} parent=15 // pred_check
          %p161 = pneg %p64
        $region22: #{tpu_custom_call.1} parent=15 // pred_check_branch
          %163 = sbr.rel (%p161) target = $region24
        $region23: #{tpu_custom_call.1} parent=15 // pred_region
          %s164 = sand.u32 %s18, 1
          %s165 = scalar_lea.sflag [#allocation6], %s164
          %s166 = sand.u32 %s54, 1
          %s167 = smul.addr %s166, 16
          %s168 = scalar_lea.vmem [#allocation5], %s167
          %170 = vsyncadd %s165, 0
          %s171 = smul.addr %s18, 2
          %s172 = smul.addr %s171, 8
          %s173 = scalar_lea.hbm %s1, %s172
          %s175 = sshll.u32 %s173, 4
          %s176 = int_to_ptr.hbm [resolvable:$true] %s175
          %s177 = sshll.u32 %s168, 4
          %s178 = int_to_ptr.vmem [resolvable:$true] %s177
          %180 = dma.hbm_to_vmem [thread:$0]  %s176, 256, %s178, %s165
        $region24: #{tpu_custom_call.1} parent=15 // pred_fallthru
          _
        // Predicated region
        $region25: #{tpu_custom_call.1} parent=15 // pred_check
          %p181 = pneg %p90
        $region26: #{tpu_custom_call.1} parent=15 // pred_check_branch
          %183 = sbr.rel (%p181) target = $region28
        $region27: #{tpu_custom_call.1} parent=15 // pred_region
          %s184 = sand.u32 %s18, 1
          %s185 = scalar_lea.sflag [#allocation6], %s184
          %s186 = sand.u32 %s80, 1
          %s187 = smul.addr %s186, 16
          %s188 = scalar_lea.vmem [#allocation7], %s187
          %190 = vsyncadd %s185, 0
          %s191 = smul.addr %s18, 2
          %s192 = smul.addr %s191, 8
          %s193 = scalar_lea.hbm %s2, %s192
          %s195 = sshll.u32 %s193, 4
          %s196 = int_to_ptr.hbm [resolvable:$true] %s195
          %s197 = sshll.u32 %s188, 4
          %s198 = int_to_ptr.vmem [resolvable:$true] %s197
          %200 = dma.hbm_to_vmem [thread:$0]  %s196, 256, %s198, %s185
        $region28: #{tpu_custom_call.1} parent=15 // pred_fallthru
          _
      $region16: #{tpu_custom_call.1} parent=5 // pred_fallthru
        _
      %p201 = scmp.le.s32.totalorder 1, %s18
      %p202 = scmp.lt.s32.totalorder %s18, 3
      %p203 = pnand %p201, %p202
      %p204 = pneg %p203
      // Predicated region
      $region29: #{tpu_custom_call.1} parent=5 // pred_check
        _
      $region30: #{tpu_custom_call.1} parent=5 // pred_check_branch
        %206 = sbr.rel (%p203) target = $region32
      $region31: #{tpu_custom_call.1} parent=5 // pred_region
        %s207 = ssub.s32 %s18, 1
        %s208 = sand.u32 %s31, 1
        %s209 = scalar_lea.sflag [#allocation3], %s208
        %s210 = sand.u32 %s31, 1
        %s211 = smul.addr %s210, 16
        %s212 = scalar_lea.vmem [#allocation2], %s211
        // Predicated region
        $region33: #{tpu_custom_call.1} parent=31 // pred_check
          %p213 = pneg %p44
        $region34: #{tpu_custom_call.1} parent=31 // pred_check_branch
          %215 = sbr.rel (%p213) target = $region36
        $region35: #{tpu_custom_call.1} parent=31 // pred_region
          %217 = dma.done %s209, 256
        $region36: #{tpu_custom_call.1} parent=31 // pred_fallthru
          _
        %s218 = sand.u32 %s23, 1
        %s219 = scalar_lea.sflag [#allocation6], %s218
        %s220 = sand.u32 %s57, 1
        %s221 = smul.addr %s220, 16
        %s222 = scalar_lea.vmem [#allocation5], %s221
        // Predicated region
        $region37: #{tpu_custom_call.1} parent=31 // pred_check
          %p223 = pneg %p70
        $region38: #{tpu_custom_call.1} parent=31 // pred_check_branch
          %225 = sbr.rel (%p223) target = $region40
        $region39: #{tpu_custom_call.1} parent=31 // pred_region
          %227 = dma.done %s219, 256
        $region40: #{tpu_custom_call.1} parent=31 // pred_fallthru
          _
        %s228 = sand.u32 %s23, 1
        %s229 = scalar_lea.sflag [#allocation6], %s228
        %s230 = sand.u32 %s83, 1
        %s231 = smul.addr %s230, 16
        %s232 = scalar_lea.vmem [#allocation7], %s231
        // Predicated region
        $region41: #{tpu_custom_call.1} parent=31 // pred_check
          %p233 = pneg %p96
        $region42: #{tpu_custom_call.1} parent=31 // pred_check_branch
          %235 = sbr.rel (%p233) target = $region44
        $region43: #{tpu_custom_call.1} parent=31 // pred_region
          %237 = dma.done %s229, 256
        $region44: #{tpu_custom_call.1} parent=31 // pred_fallthru
          _
        %s238 = sand.u32 %s31, 1
        %s239 = scalar_lea.sflag [#allocation3], %s238
        %s240 = sand.u32 %s31, 1
        %s241 = smul.addr %s240, 16
        %s242 = scalar_lea.vmem [#allocation2], %s241
        %p243 = pneg %p44
        %p244 = pneg %p41
        %s245 = sand.u32 %s23, 1
        %s246 = scalar_lea.sflag [#allocation6], %s245
        %s247 = sand.u32 %s57, 1
        %s248 = smul.addr %s247, 16
        %s249 = scalar_lea.vmem [#allocation5], %s248
        %p250 = pneg %p70
        %p251 = pneg %p67
        %s252 = sand.u32 %s23, 1
        %s253 = scalar_lea.sflag [#allocation6], %s252
        %s254 = sand.u32 %s83, 1
        %s255 = smul.addr %s254, 16
        %s256 = scalar_lea.vmem [#allocation7], %s255
        %p257 = pneg %p96
        %p258 = pneg %p93
        %p259 = pneg %p122
        %p260 = pneg %p119
        %s261 = sand.u32 %s109, 1
        %s262 = scalar_lea.sflag [#allocation4], %s261
        %s263 = sand.u32 %s109, 1
        %s264 = smul.addr %s263, 8
        %s265 = scalar_lea.vmem [#allocation8], %s264
        %v266 = vld [vmem:[%s212] sm:$0xff]
        %v267 = vld [vmem:[%s212 + $0x8] sm:$0xff]
        %v268 = vld [vmem:[%s222] sm:$0xff]
        %v269 = vld [vmem:[%s222 + $0x8] sm:$0xff]
        %v270 = vld [vmem:[%s232] sm:$0xff]
        %v271 = vld [vmem:[%s232 + $0x8] sm:$0xff]
        %v272 = vadd.f32 %v268, %v269
        %273 = vadd.xlane.f32.xlu0 %v272
        %v274 = vpop.xlane.xlu0 %273
        %v275 = vmul.f32 %v268, %v268
        %v276 = vmul.f32 %v269, %v269
        %v277 = vadd.f32 %v275, %v276
        %278 = vadd.xlane.f32.xlu0 %v277
        %v279 = vpop.xlane.xlu0 %278
        %v280 = vmul.f32 %v274, 0.00390625
        %v281 = vmul.f32 %v274, %v280
        %v282 = vsub.f32 %v279, %v281
        %v283 = vmul.f32 %v282, 0.003921569
        %v284 = vsub.f32 %v268, %v280
        %v285 = vsub.f32 %v269, %v280
        %v286 = vrsqrt.pop %v283
        %v287 = vmul.f32 %v286, %v283
        %v288 = vmul.f32 %v287, %v286
        %v289 = vmul.f32 0.5, %v288
        %v290 = vsub.f32 1.5, %v289
        %v291 = vmul.f32 %v286, %v290
        %vm292 = vweird.f32 %v283
        %vm293 = vweird.f32 %v286
        %vm294 = vmor %vm292, %vm293
        %v295 = vsel %vm294, %v286, %v291
        %v296 = vmul.f32 %v295, 0.25
        %v297 = vmul.f32 %v284, %v296
        %v298 = vmul.f32 %v285, %v296
        %v299 = vadd.f32 %v270, %v271
        %300 = vadd.xlane.f32.xlu0 %v299
        %v301 = vpop.xlane.xlu0 %300
        %v302 = vmul.f32 %v270, %v270
        %v303 = vmul.f32 %v271, %v271
        %v304 = vadd.f32 %v302, %v303
        %305 = vadd.xlane.f32.xlu0 %v304
        %v306 = vpop.xlane.xlu0 %305
        %v307 = vmul.f32 %v301, 0.00390625
        %v308 = vmul.f32 %v301, %v307
        %v309 = vsub.f32 %v306, %v308
        %v310 = vmul.f32 %v309, 0.003921569
        %v311 = vsub.f32 %v270, %v307
        %v312 = vsub.f32 %v271, %v307
        %v313 = vrsqrt.pop %v310
        %v314 = vmul.f32 %v313, %v310
        %v315 = vmul.f32 %v314, %v313
        %v316 = vmul.f32 0.5, %v315
        %v317 = vsub.f32 1.5, %v316
        %v318 = vmul.f32 %v313, %v317
        %vm319 = vweird.f32 %v310
        %vm320 = vweird.f32 %v313
        %vm321 = vmor %vm319, %vm320
        %v322 = vsel %vm321, %v313, %v318
        %v323 = vmul.f32 %v322, 0.25
        %v324 = vmul.f32 %v311, %v323
        %v325 = vmul.f32 %v312, %v323
        %v326 = vadd.f32 %v297, %v324
        %v327 = vadd.f32 %v298, %v325
        %v328 = vmul.f32 %v266, 0.25
        %v329 = vmul.f32 %v267, 0.25
        %v330 = vmax.f32 %v328, %v329
        %331 = vmax.xlane.f32.xlu0 %v330
        %v332 = vpop.xlane.xlu0 %331
        %v333 = vsub.f32 %v328, %v332
        %v334 = vsub.f32 %v329, %v332
        %v335 = vmul.f32 %v333, 1.442695
        %v336 = vpow.pop %v335
        %v337 = vmul.f32 %v334, 1.442695
        %v338 = vpow.pop %v337
        %v339 = vadd.f32 %v336, %v338
        %340 = vadd.xlane.f32.xlu0 %v339
        %v341 = vpop.xlane.xlu0 %340
        %v342 = vlog2.pop %v341
        %v343 = vmul.f32 %v342, 0.6931472
        %v344 = vsub.f32 %v333, %v343
        %v345 = vsub.f32 %v334, %v343
        %v346 = vmax.f32 %v326, %v327
        %347 = vmax.xlane.f32.xlu0 %v346
        %v348 = vpop.xlane.xlu0 %347
        %v349 = vsub.f32 %v326, %v348
        %v350 = vsub.f32 %v327, %v348
        %v351 = vmul.f32 %v349, 1.442695
        %v352 = vpow.pop %v351
        %v353 = vmul.f32 %v350, 1.442695
        %v354 = vpow.pop %v353
        %v355 = vadd.f32 %v352, %v354
        %356 = vadd.xlane.f32.xlu0 %v355
        %v357 = vpop.xlane.xlu0 %356
        %v358 = vsub.f32 %v349, %v344
        %v359 = vsub.f32 %v350, %v345
        %v360 = vmul.f32 %v352, %v358
        %v361 = vmul.f32 %v354, %v359
        %v362 = vadd.f32 %v360, %v361
        %363 = vadd.xlane.f32.xlu0 %v362
        %v364 = vpop.xlane.xlu0 %363
        %v365 = vrcp.pop %v357
        %v366 = vmul.f32 %v357, %v365
        %v367 = vsub.f32 1.0, %v366
        %v368 = vmul.f32 %v365, %v367
        %v369 = vadd.f32 %v365, %v368
        %vm370 = vweird.f32 %v357
        %vm371 = vweird.f32 %v365
        %vm372 = vmor %vm370, %vm371
        %v373 = vsel %vm372, %v365, %v369
        %v374 = vand.u32 2147483647, %v357
        %vm375 = vcmp.eq.f32.partialorder %v374, 8.507059e+37
        %v376 = vand.u32 %v357, 2147483648
        %v377 = vor.u32 1.1754944e-38, %v376
        %v378 = vsel %vm375, %v377, %v373
        %v379 = vmul.f32 %v364, %v378
        %v380 = vlog2.pop %v357
        %v381 = vmul.f32 %v380, 0.6931472
        %v382 = vsub.f32 %v379, %v381
        %s383 = smul.u32 %s23, 8
        %v384 = vlaneseq
        %v385 = vshrl.u32 %v384, 7
        %v386 = vstv %s383
        %v387 = vadd.s32 %v385, %v386
        %vm388 = vcmp.lt.s32.totalorder %v387, 13
        %v389 = vsel %vm388, %v382, 0.0
        %vm390 = vcmask 7168
        %v391 = vsel %vm390, %v389, 0.0
        %392 = vadd.xlane.f32.xlu0 %v391
        %v393 = vpop.xlane.xlu0 %392
        %v394 = vrot.slane %v393, 4
        %v395 = vadd.f32 %v393, %v394
        %v396 = vrot.slane %v395, 2
        %v397 = vadd.f32 %v395, %v396
        %v398 = vrot.slane %v397, 1
        %v399 = vadd.f32 %v397, %v398
        %s400 = vtos %v399
        %v401 = vstv %s400
        %402 = vst [vmem:[%s265] sm:$0xff] %v401
        %s403 = sand.u32 %s109, 1
        %s404 = scalar_lea.sflag [#allocation4], %s403
        %s405 = sand.u32 %s109, 1
        %s406 = smul.addr %s405, 8
        %s407 = scalar_lea.vmem [#allocation8], %s406
        // Predicated region
        $region45: #{tpu_custom_call.1} parent=31 // pred_check
          %p408 = pneg %p119
        $region46: #{tpu_custom_call.1} parent=31 // pred_check_branch
          %410 = sbr.rel (%p408) target = $region48
        $region47: #{tpu_custom_call.1} parent=31 // pred_region
          %412 = vsyncadd %s404, 0
          %s413 = smul.addr %s23, 8
          %s414 = scalar_lea.hbm %s3, %s413
          %s416 = sshll.u32 %s407, 4
          %s417 = int_to_ptr.vmem [resolvable:$true] %s416
          %s418 = sshll.u32 %s414, 4
          %s419 = int_to_ptr.hbm [resolvable:$true] %s418
          %421 = dma.vmem_to_hbm [thread:$0]  %s417, 128, %s419, %s404
        $region48: #{tpu_custom_call.1} parent=31 // pred_fallthru
          _
      $region32: #{tpu_custom_call.1} parent=5 // pred_fallthru
        _
      %p422 = scmp.le.s32.totalorder 2, %s18
      // Predicated region
      $region49: #{tpu_custom_call.1} parent=5 // pred_check
        %p423 = pneg %p422
      $region50: #{tpu_custom_call.1} parent=5 // pred_check_branch
        %425 = sbr.rel (%p423) target = $region52
      $region51: #{tpu_custom_call.1} parent=5 // pred_region
        %s426 = ssub.s32 %s18, 2
        // Predicated region
        $region53: #{tpu_custom_call.1} parent=51 // pred_check
          %p427 = pneg %p125
        $region54: #{tpu_custom_call.1} parent=51 // pred_check_branch
          %429 = sbr.rel (%p427) target = $region56
        $region55: #{tpu_custom_call.1} parent=51 // pred_region
          %s430 = sand.u32 %s110, 1
          %s431 = scalar_lea.sflag [#allocation4], %s430
          %s432 = sand.u32 %s110, 1
          %s433 = smul.addr %s432, 8
          %s434 = scalar_lea.vmem [#allocation8], %s433
          %436 = dma.done %s431, 128
        $region56: #{tpu_custom_call.1} parent=51 // pred_fallthru
          _
      $region52: #{tpu_custom_call.1} parent=5 // pred_fallthru
        _
    $region6: #{tpu_custom_call.1} parent=1 // loop_footer
      %s22 = sadd.s32 1, %s18
    $region7: #{tpu_custom_call.1} parent=1 // loop_footer_branch
      %17 = sbr.rel target = $region3
    $region8: #{tpu_custom_call.1} parent=1 // loop_exit
      _
    %437 = vsyncpa [#allocation3], 1
    %s438 = scalar_lea.sflag [#allocation3], 1
    %439 = vsyncpa %s438, 1
    %440 = vsyncpa [#allocation6], 1
    %s441 = scalar_lea.sflag [#allocation6], 1
    %442 = vsyncpa %s441, 1
    %443 = vsyncpa [#allocation4], 1
    %s444 = scalar_lea.sflag [#allocation4], 1
    %445 = vsyncpa %s444, 1

</llo_original>
